<compile_context>
chip_gen: v6e
topology: v6e:2x2x1
jax: 0.10.0
libtpu: 0.0.40
codegen_flags: <defaults>
</compile_context>

<pallas_src>
import math
import functools

import jax
import jax.numpy as jnp
from jax import lax
from jax.experimental import pallas as pl
from jax.experimental.pallas import tpu as pltpu


# ---------------------------------------------------------------------------
# Path A: embedding table resident in VMEM (small / medium vocab tables).
# ---------------------------------------------------------------------------
def _embed_vmem_kernel(ids_ref, emb_ref, pe_ref, out_ref, buf_ref, *,
                       rows, seq_len, scale):
    t = pl.program_id(0)          # tile index within the sequence (PE axis)
    b = pl.program_id(1)          # batch index (inner axis -> PE block reuse)
    base = b * seq_len + t * rows

    def gather(r, carry):
        vid = ids_ref[base + r]                                   # id from SMEM
        buf_ref[pl.ds(r, 1), :] = emb_ref[pl.ds(vid, 1), :].astype(jnp.float32)
        return carry

    lax.fori_loop(0, rows, gather, 0, unroll=min(8, rows))

    # Fused scale + positional-encoding add in f32; cast only at the store.
    out_ref[...] = (buf_ref[...] * scale
                    + pe_ref[...].astype(jnp.float32)).astype(out_ref.dtype)


# ---------------------------------------------------------------------------
# Path B: embedding table in HBM, per-row DMA gather double-buffered across
# grid steps (large vocab tables that should not live in VMEM).
# ---------------------------------------------------------------------------
def _embed_hbm_kernel(ids_ref, emb_hbm, pe_ref, out_ref, row_buf, sems, *,
                      rows, seq_len, scale):
    t = pl.program_id(0)
    b = pl.program_id(1)
    nb = pl.num_programs(1)
    base_t = t * rows
    unroll = min(8, rows)

    def issue(bb, slot_idx):
        base = bb * seq_len + base_t
        def body(r, carry):
            vid = ids_ref[base + r]
            pltpu.make_async_copy(
                emb_hbm.at[pl.ds(vid, 1), :],
                row_buf.at[slot_idx, pl.ds(r, 1), :],
                sems.at[slot_idx],
            ).start()
            return carry
        lax.fori_loop(0, rows, body, 0, unroll=unroll)

    slot = b % 2

    # Prime the pipeline at the start of every batch sweep (b == 0 recurs once
    # per tile-axis step, so this also works when the tile axis is megacore-
    # sharded across TensorCores).
    @pl.when(b == 0)
    def _():
        issue(0, 0)

    # Prefetch the next grid step's rows into the other slot; the ids are
    # already fully resident in SMEM, so this overlaps with the current tile's
    # DMA completion + compute + output writeback.
    @pl.when(b + 1 < nb)
    def _():
        issue(b + 1, (b + 1) % 2)

    # Wait for the current tile.  We reconstruct descriptors identical to the
    # ones issued (same src row / dst slot / shared per-slot semaphore), so a
    # future shape or dtype change cannot desynchronize starts from waits.
    def wait_body(r, carry):
        vid = ids_ref[b * seq_len + base_t + r]
        pltpu.make_async_copy(
            emb_hbm.at[pl.ds(vid, 1), :],
            row_buf.at[slot, pl.ds(r, 1), :],
            sems.at[slot],
        ).wait()
        return carry
    lax.fori_loop(0, rows, wait_body, 0, unroll=unroll)

    # Fused scale + PE add in f32, cast at the store (lane-dense vst).
    out_ref[...] = (row_buf[slot].astype(jnp.float32) * scale
                    + pe_ref[...].astype(jnp.float32)).astype(out_ref.dtype)


def tgt_embedding(tgt, emb_table, pe, token_dim, *, row_tile=None,
                  force_hbm_gather=False,
                  table_vmem_limit_bytes=16 * 1024 * 1024):
    """Pallas forward of TGT_Embedding (dropout = identity / eval mode)."""
    B, S = tgt.shape
    V, D = emb_table.shape
    assert D == token_dim
    scale = float(math.sqrt(token_dim))
    out_dtype = emb_table.dtype
    itemsize = emb_table.dtype.itemsize

    # Row tiles stay within one sequence; prefer large tiles (up to 256 rows).
    # On v7x (64 MiB VMEM / 32 MiB scoped default) the double-buffered
    # row_buf + PE + out blocks are ~6*row_tile*D*4 bytes -> 256 rows with
    # D<=4096 stays comfortably inside the budget.
    if row_tile is None:
        row_tile = min(256, S)
    assert S % row_tile == 0, "row_tile must divide S"
    assert row_tile % 8 == 0 or row_tile == S, "row tile must be sublane-aligned"
    tiles_per_seq = S // row_tile

    ids_flat = tgt.reshape(B * S).astype(jnp.int32)
    pe_s = pe[:S].astype(jnp.float32)

    table_bytes = V * D * itemsize
    use_vmem_table = (not force_hbm_gather) and (table_bytes <= table_vmem_limit_bytes)

    # Grid: (tile-within-sequence, batch).  Batch is the inner (fastest) axis
    # and the PE index_map only depends on the tile axis, so the PE block stays
    # resident across the whole batch sweep (PE streamed once per call, not B
    # times).  The tile axis is "parallel" (megacore-shardable on v7x), the
    # PE-reuse axis is "arbitrary" so residency is not broken.
    grid = (tiles_per_seq, B)
    pe_spec = pl.BlockSpec((row_tile, D), lambda t, b, ids: (t, 0))
    out_spec = pl.BlockSpec((row_tile, D),
                            lambda t, b, ids: (b * tiles_per_seq + t, 0))

    if use_vmem_table:
        kernel = functools.partial(_embed_vmem_kernel, rows=row_tile,
                                   seq_len=S, scale=scale)
        in_specs = [
            # Constant index_map -> table DMA'd into VMEM once, then resident.
            pl.BlockSpec((V, D), lambda t, b, ids: (0, 0)),
            pe_spec,
        ]
        scratch = [pltpu.VMEM((row_tile, D), jnp.float32)]       # f32 gather buf
        bytes_accessed = (4 * B * S                 # ids
                          + table_bytes             # table loaded once
                          + 4 * S * D               # PE streamed once
                          + itemsize * B * S * D)   # output writes
    else:
        kernel = functools.partial(_embed_hbm_kernel, rows=row_tile,
                                   seq_len=S, scale=scale)
        in_specs = [
            pl.BlockSpec(memory_space=pl.ANY),                   # table in HBM
            pe_spec,
        ]
        scratch = [
            pltpu.VMEM((2, row_tile, D), emb_table.dtype),       # 2-slot row buf
            pltpu.SemaphoreType.DMA((2,)),                       # one sem / slot
        ]
        bytes_accessed = (4 * B * S
                          + itemsize * B * S * D    # gathered rows
                          + 4 * S * D               # PE streamed once
                          + itemsize * B * S * D)   # output writes

    grid_spec = pltpu.PrefetchScalarGridSpec(
        num_scalar_prefetch=1,                       # ids -> SMEM
        grid=grid,
        in_specs=in_specs,
        out_specs=out_spec,
        scratch_shapes=scratch,
    )

    out_flat = pl.pallas_call(
        kernel,
        out_shape=jax.ShapeDtypeStruct((B * S, D), out_dtype),
        grid_spec=grid_spec,
        compiler_params=pltpu.CompilerParams(
            dimension_semantics=("parallel", "arbitrary")),
        cost_estimate=pl.CostEstimate(
            flops=2 * B * S * D, transcendentals=0,
            bytes_accessed=int(bytes_accessed)),
    )(ids_flat, emb_table, pe_s)

    return out_flat.reshape(B, S, D)


def make_positional_encoding(max_len, token_dim):
    positions = jnp.arange(max_len, dtype=jnp.float32)[:, None]           # (L, 1)
    div_term = jnp.exp(
        jnp.arange(0, token_dim, 2, dtype=jnp.float32)
        * (-math.log(10000.0) / token_dim)
    )                                                                      # (D/2,)
    pe = jnp.zeros((max_len, token_dim), dtype=jnp.float32)
    pe = pe.at[:, 0::2].set(jnp.sin(positions * div_term))
    pe = pe.at[:, 1::2].set(jnp.cos(positions * div_term))
    return pe


if __name__ == "__main__":
    # small shapes consistent with the module; D chosen lane-dense (multiple of 128)
    B, S = 2, 8
    token_dim = 128
    vocab_dim = 256
    max_len = 16

    key = jax.random.PRNGKey(0)
    k_emb, k_ids = jax.random.split(key)

    # nn.Embedding default init: N(0, 1)
    emb_table = jax.random.normal(k_emb, (vocab_dim, token_dim), dtype=jnp.float32)
    pe = make_positional_encoding(max_len, token_dim)
    tgt = jax.random.randint(k_ids, (B, S), 0, vocab_dim, dtype=jnp.int32)

    # pure-JAX reference (dropout in eval mode = identity)
    ref = emb_table[tgt] * math.sqrt(token_dim) + pe[:S][None, :, :]

    # Path A: small table -> resident-in-VMEM gather (default).
    out_vmem = jax.block_until_ready(tgt_embedding(tgt, emb_table, pe, token_dim))
    assert out_vmem.shape == (B, S, token_dim)
    assert jnp.allclose(out_vmem, ref, atol=1e-5, rtol=1e-5), "VMEM path mismatch"

    # Path B: large-vocab path (HBM table, double-buffered DMA gather), forced
    # here on the small table purely to validate it end-to-end.
    out_hbm = jax.block_until_ready(
        tgt_embedding(tgt, emb_table, pe, token_dim, force_hbm_gather=True))
    assert jnp.allclose(out_hbm, ref, atol=1e-5, rtol=1e-5), "HBM path mismatch"

    print("KERNEL_OK")
</pallas_src>

<mosaic_0001>
module attributes {stable_mosaic.version = 11 : i64} {
  func.func @_embed_vmem_kernel(%arg0: i32, %arg1: i32, %arg2: memref<16xi32, #tpu.memory_space<smem>>, %arg3: memref<256x128xf32, #tpu.memory_space<vmem>>, %arg4: memref<8x128xf32, #tpu.memory_space<vmem>>, %arg5: memref<8x128xf32, #tpu.memory_space<vmem>>, %arg6: memref<8x128xf32, #tpu.memory_space<vmem>>) attributes {dimension_semantics = [#tpu.dimension_semantics<parallel>, #tpu.dimension_semantics<arbitrary>], iteration_bounds = array<i64: 1, 2>, scalar_prefetch = 1 : i64, scratch_operands = 1 : i64, tpu.core_type = #tpu.core_type<tc>, window_params = [{pipeline_mode = #tpu.pipeline_mode<synchronous>, transform_indices = @transform_0, window_bounds = array<i64: 256, 128>}, {transform_indices = @transform_1, window_bounds = array<i64: 8, 128>}, {transform_indices = @transform_2, window_bounds = array<i64: 8, 128>}]} {
    %c8_i32 = arith.constant 8 : i32
    %0 = arith.muli %arg1, %c8_i32 : i32
    %c8_i32_0 = arith.constant 8 : i32
    %1 = arith.muli %arg0, %c8_i32_0 : i32
    %2 = arith.addi %0, %1 : i32
    %c0_i32 = arith.constant 0 : i32
    %3 = arith.addi %2, %c0_i32 : i32
    %4 = arith.index_cast %3 : i32 to index
    %5 = memref.load %arg2[%4] : memref<16xi32, #tpu.memory_space<smem>>
    %6 = arith.index_cast %5 : i32 to index
    %c0 = arith.constant 0 : index
    %7 = vector.load %arg3[%6, %c0] : memref<256x128xf32, #tpu.memory_space<vmem>>, vector<1x128xf32>
    %8 = arith.index_cast %c0_i32 : i32 to index
    %c0_1 = arith.constant 0 : index
    %9 = vector.load %arg6[%8, %c0_1] : memref<8x128xf32, #tpu.memory_space<vmem>>, vector<1x128xf32>
    tpu.vector_store %arg6[%8, %c0_1], %7 {strides = array<i32>} : memref<8x128xf32, #tpu.memory_space<vmem>>, vector<1x128xf32>,
    %c1_i32 = arith.constant 1 : i32
    %10 = arith.addi %2, %c1_i32 : i32
    %11 = arith.index_cast %10 : i32 to index
    %12 = memref.load %arg2[%11] : memref<16xi32, #tpu.memory_space<smem>>
    %13 = arith.index_cast %12 : i32 to index
    %c0_2 = arith.constant 0 : index
    %14 = vector.load %arg3[%13, %c0_2] : memref<256x128xf32, #tpu.memory_space<vmem>>, vector<1x128xf32>
    %15 = arith.index_cast %c1_i32 : i32 to index
    %c0_3 = arith.constant 0 : index
    %16 = vector.load %arg6[%15, %c0_3] : memref<8x128xf32, #tpu.memory_space<vmem>>, vector<1x128xf32>
    tpu.vector_store %arg6[%15, %c0_3], %14 {strides = array<i32>} : memref<8x128xf32, #tpu.memory_space<vmem>>, vector<1x128xf32>,
    %c2_i32 = arith.constant 2 : i32
    %17 = arith.addi %2, %c2_i32 : i32
    %18 = arith.index_cast %17 : i32 to index
    %19 = memref.load %arg2[%18] : memref<16xi32, #tpu.memory_space<smem>>
    %20 = arith.index_cast %19 : i32 to index
    %c0_4 = arith.constant 0 : index
    %21 = vector.load %arg3[%20, %c0_4] : memref<256x128xf32, #tpu.memory_space<vmem>>, vector<1x128xf32>
    %22 = arith.index_cast %c2_i32 : i32 to index
    %c0_5 = arith.constant 0 : index
    %23 = vector.load %arg6[%22, %c0_5] : memref<8x128xf32, #tpu.memory_space<vmem>>, vector<1x128xf32>
    tpu.vector_store %arg6[%22, %c0_5], %21 {strides = array<i32>} : memref<8x128xf32, #tpu.memory_space<vmem>>, vector<1x128xf32>,
    %c3_i32 = arith.constant 3 : i32
    %24 = arith.addi %2, %c3_i32 : i32
    %25 = arith.index_cast %24 : i32 to index
    %26 = memref.load %arg2[%25] : memref<16xi32, #tpu.memory_space<smem>>
    %27 = arith.index_cast %26 : i32 to index
    %c0_6 = arith.constant 0 : index
    %28 = vector.load %arg3[%27, %c0_6] : memref<256x128xf32, #tpu.memory_space<vmem>>, vector<1x128xf32>
    %29 = arith.index_cast %c3_i32 : i32 to index
    %c0_7 = arith.constant 0 : index
    %30 = vector.load %arg6[%29, %c0_7] : memref<8x128xf32, #tpu.memory_space<vmem>>, vector<1x128xf32>
    tpu.vector_store %arg6[%29, %c0_7], %28 {strides = array<i32>} : memref<8x128xf32, #tpu.memory_space<vmem>>, vector<1x128xf32>,
    %c4_i32 = arith.constant 4 : i32
    %31 = arith.addi %2, %c4_i32 : i32
    %32 = arith.index_cast %31 : i32 to index
    %33 = memref.load %arg2[%32] : memref<16xi32, #tpu.memory_space<smem>>
    %34 = arith.index_cast %33 : i32 to index
    %c0_8 = arith.constant 0 : index
    %35 = vector.load %arg3[%34, %c0_8] : memref<256x128xf32, #tpu.memory_space<vmem>>, vector<1x128xf32>
    %36 = arith.index_cast %c4_i32 : i32 to index
    %c0_9 = arith.constant 0 : index
    %37 = vector.load %arg6[%36, %c0_9] : memref<8x128xf32, #tpu.memory_space<vmem>>, vector<1x128xf32>
    tpu.vector_store %arg6[%36, %c0_9], %35 {strides = array<i32>} : memref<8x128xf32, #tpu.memory_space<vmem>>, vector<1x128xf32>,
    %c5_i32 = arith.constant 5 : i32
    %38 = arith.addi %2, %c5_i32 : i32
    %39 = arith.index_cast %38 : i32 to index
    %40 = memref.load %arg2[%39] : memref<16xi32, #tpu.memory_space<smem>>
    %41 = arith.index_cast %40 : i32 to index
    %c0_10 = arith.constant 0 : index
    %42 = vector.load %arg3[%41, %c0_10] : memref<256x128xf32, #tpu.memory_space<vmem>>, vector<1x128xf32>
    %43 = arith.index_cast %c5_i32 : i32 to index
    %c0_11 = arith.constant 0 : index
    %44 = vector.load %arg6[%43, %c0_11] : memref<8x128xf32, #tpu.memory_space<vmem>>, vector<1x128xf32>
    tpu.vector_store %arg6[%43, %c0_11], %42 {strides = array<i32>} : memref<8x128xf32, #tpu.memory_space<vmem>>, vector<1x128xf32>,
    %c6_i32 = arith.constant 6 : i32
    %45 = arith.addi %2, %c6_i32 : i32
    %46 = arith.index_cast %45 : i32 to index
    %47 = memref.load %arg2[%46] : memref<16xi32, #tpu.memory_space<smem>>
    %48 = arith.index_cast %47 : i32 to index
    %c0_12 = arith.constant 0 : index
    %49 = vector.load %arg3[%48, %c0_12] : memref<256x128xf32, #tpu.memory_space<vmem>>, vector<1x128xf32>
    %50 = arith.index_cast %c6_i32 : i32 to index
    %c0_13 = arith.constant 0 : index
    %51 = vector.load %arg6[%50, %c0_13] : memref<8x128xf32, #tpu.memory_space<vmem>>, vector<1x128xf32>
    tpu.vector_store %arg6[%50, %c0_13], %49 {strides = array<i32>} : memref<8x128xf32, #tpu.memory_space<vmem>>, vector<1x128xf32>,
    %c7_i32 = arith.constant 7 : i32
    %52 = arith.addi %2, %c7_i32 : i32
    %53 = arith.index_cast %52 : i32 to index
    %54 = memref.load %arg2[%53] : memref<16xi32, #tpu.memory_space<smem>>
    %55 = arith.index_cast %54 : i32 to index
    %c0_14 = arith.constant 0 : index
    %56 = vector.load %arg3[%55, %c0_14] : memref<256x128xf32, #tpu.memory_space<vmem>>, vector<1x128xf32>
    %57 = arith.index_cast %c7_i32 : i32 to index
    %c0_15 = arith.constant 0 : index
    %58 = vector.load %arg6[%57, %c0_15] : memref<8x128xf32, #tpu.memory_space<vmem>>, vector<1x128xf32>
    tpu.vector_store %arg6[%57, %c0_15], %56 {strides = array<i32>} : memref<8x128xf32, #tpu.memory_space<vmem>>, vector<1x128xf32>,
    %c8_i32_16 = arith.constant 8 : i32
    %c0_17 = arith.constant 0 : index
    %c0_18 = arith.constant 0 : index
    %59 = vector.load %arg6[%c0_17, %c0_18] : memref<8x128xf32, #tpu.memory_space<vmem>>, vector<8x128xf32>
    %cst = arith.constant 11.3137083 : f32
    %60 = vector.broadcast %cst : f32 to vector<8x128xf32>
    %61 = arith.mulf %59, %60 : vector<8x128xf32>
    %c0_19 = arith.constant 0 : index
    %c0_20 = arith.constant 0 : index
    %62 = vector.load %arg4[%c0_19, %c0_20] : memref<8x128xf32, #tpu.memory_space<vmem>>, vector<8x128xf32>
    %63 = arith.addf %61, %62 : vector<8x128xf32>
    %c0_21 = arith.constant 0 : index
    %c0_22 = arith.constant 0 : index
    %64 = vector.load %arg5[%c0_21, %c0_22] : memref<8x128xf32, #tpu.memory_space<vmem>>, vector<8x128xf32>
    tpu.vector_store %arg5[%c0_21, %c0_22], %63 {strides = array<i32>} : memref<8x128xf32, #tpu.memory_space<vmem>>, vector<8x128xf32>,
    return
  }
  func.func @transform_0(%arg0: i32, %arg1: i32, %arg2: memref<16xi32, #tpu.memory_space<smem>>) -> (i32, i32) {
    %c0_i32 = arith.constant 0 : i32
    %c0_i32_0 = arith.constant 0 : i32
    %c0_i32_1 = arith.constant 0 : i32
    return %c0_i32, %c0_i32_0 : i32, i32
  }
  func.func @transform_1(%arg0: i32, %arg1: i32, %arg2: memref<16xi32, #tpu.memory_space<smem>>) -> (i32, i32) {
    %c0_i32 = arith.constant 0 : i32
    %c0_i32_0 = arith.constant 0 : i32
    return %arg0, %c0_i32 : i32, i32
  }
  func.func @transform_2(%arg0: i32, %arg1: i32, %arg2: memref<16xi32, #tpu.memory_space<smem>>) -> (i32, i32) {
    %c1_i32 = arith.constant 1 : i32
    %0 = arith.muli %arg1, %c1_i32 : i32
    %1 = arith.addi %0, %arg0 : i32
    %c0_i32 = arith.constant 0 : i32
    %c0_i32_0 = arith.constant 0 : i32
    return %1, %c0_i32 : i32, i32
  }
}

</mosaic_0001>

<llo_original>
// kernel: tpu_custom_call.1
$region0: #{tpu_custom_call.1}
  #allocation0 [shape = 'u32[]', space=smem, size = 0x4, offset = 0x4, fixed_abs, tag = 'smem constant byte address 0x4 - core index']
  #allocation1 [shape = 'u32[144,128]{1,0:T(1,128)}', space=vmem, size = 0x12000, scoped, tag = 'internal scratch']
  #allocation2 [shape = 'f32[8,128]{1,0:T(8,128)}', space=vmem, size = 0x1000, scoped, tag = 'scratch operand']
  #allocation3 [shape = 's32[1]{0}', space=sflag, size = 0x4, scoped, tag = 'scoped memory for tpu_custom_call.1']
  #allocation4 [shape = 'u8[512]{0}', space=smem, size = 0x200, scoped, tag = 'prefetched SMEM operand 0']
  %s0 = inlined_call_operand.hbm [shape: s32[16], index: 0, kind: input, shape index: {}]
  %s1 = inlined_call_operand.hbm [shape: f32[256,128], index: 1, kind: input, shape index: {}]
  %s2 = inlined_call_operand.hbm [shape: f32[8,128], index: 2, kind: input, shape index: {}]
  %s3 = inlined_call_operand.hbm [shape: f32[16,128], index: 3, kind: output, shape index: {}]
  %s4 = sld [smem:[#allocation0]]
  $region49: #{tpu_custom_call.1} parent=0
    _
  %s6 = ssub.s32 1, %s4
  %s7 = scalar_select 0, %s6, %s4
  %9 = dma.hbm_to_smem %s0, 16, [#allocation4], [#allocation3]
  %10 = dma.done [#allocation3], 16
  %11 = sfence
  $region1: #{tpu_custom_call.1} parent=0
    #allocation5 [shape = 'u8[131072]{0}', space=vmem, size = 0x20000, scoped, tag = 'input window, operand 1, single buffered']
    #allocation6 [shape = 's32[2]{0}', space=sflag, size = 0x8, scoped, tag = 'scoped memory for tpu_custom_call.1']
    #allocation7 [shape = 's32[2]{0}', space=sflag, size = 0x8, scoped, tag = 'scoped memory for tpu_custom_call.1']
    #allocation8 [shape = 'u8[4096]{0}', space=vmem, size = 0x1000, scoped, tag = 'input window, operand 2, single buffered']
    #allocation9 [shape = 's32[1]{0}', space=sflag, size = 0x4, scoped, tag = 'scoped memory for tpu_custom_call.1']
    #allocation10 [shape = 'u8[8192]{0}', space=vmem, size = 0x2000, scoped, tag = 'output window, operand 0']
    %12 = vsyncpa [#allocation6], 0
    %13 = vsyncpa [#allocation9], 0
    %14 = vsyncpa [#allocation7], 0
    %s15 = scalar_lea.sflag [#allocation7], 1
    %16 = vsyncpa %s15, 0
    loop: start=0, step=1, limit=4
    $region2: #{tpu_custom_call.1} parent=1 // loop_pre_header
      _
    $region3: #{tpu_custom_call.1} parent=1 // loop_header
      %s18 = sphi 0, %s22
      %p19 = scmp.ge.s32.totalorder %s18, 4
      %s25 = sphi 0, %s37
      %s26 = sphi 0, %s33
      %s27 = sphi 0, %s25
      %s28 = sphi 0, %s26
      %s29 = sphi 0, %s27
      %s30 = sphi 0, %s28
      %s38 = sphi 0, %s38
      %s40 = sphi 0, %s38
      %s41 = sphi 0, %s40
      %s55 = sphi 0, %s41
      %s61 = sphi 0, %s63
      %s64 = sphi 0, %s61
      %s65 = sphi 0, %s64
      %s81 = sphi 0, %s65
      %s89 = sphi 0, %s91
      %s92 = sphi 0, %s89
      %s93 = sphi 0, %s92
      %s109 = sphi 0, %s93
    $region4: #{tpu_custom_call.1} parent=1 // loop_header_branch
      %21 = sbr.rel (%p19) target = $region8
    $region5: #{tpu_custom_call.1} parent=1 // loop_body
      %s23 = ssub.s32 %s18, 1
      %s24 = ssub.s32 %s18, 2
      %s31 = sadd.s32 1, %s26
      %p32 = scmp.ge.s32.totalorder %s31, 2
      %s33 = scalar_select %p32, 0, %s31
      %s34 = sadd.s32 1, %s25
      %s35 = scalar_select %p32, %s34, %s25
      %p36 = scmp.ge.s32.totalorder %s35, 1
      %s37 = scalar_select %p36, 0, %s35
      %s39 = sadd.s32 %s38, 1
      %p42 = scmp.eq.s32.totalorder %s18, 1
      %p43 = scmp.ne.s32.totalorder %s38, %s40
      %p44 = scmp.eq.s32.totalorder %s18, 0
      %p45 = por %p43, %p44
      %p46 = scmp.ne.s32.totalorder %s38, %s40
      %p47 = scmp.eq.s32.totalorder %s23, 1
      %p48 = por %p46, %p47
      %p49 = scmp.ne.s32.totalorder %s40, %s41
      %p50 = scmp.eq.s32.totalorder %s23, 0
      %p51 = por %p49, %p50
      %p52 = scmp.ne.s32.totalorder %s40, %s41
      %p53 = scmp.eq.s32.totalorder %s24, 1
      %p54 = por %p52, %p53
      %p56 = scmp.ne.s32.totalorder %s41, %s55
      %p57 = scmp.eq.s32.totalorder %s24, 0
      %p58 = por %p56, %p57
      %s59 = ssub.s32 %s25, %s37
      %p60 = scmp.eq.s32.totalorder %s59, 0
      %s62 = sadd.s32 %s61, 1
      %s63 = scalar_select %p60, %s61, %s62
      %p66 = pneg %p60
      %p67 = scmp.eq.s32.totalorder %s18, 1
      %p68 = por %p66, %p67
      %p69 = scmp.ne.s32.totalorder %s61, %s64
      %p70 = scmp.eq.s32.totalorder %s18, 0
      %p71 = por %p69, %p70
      %p72 = scmp.ne.s32.totalorder %s61, %s64
      %p73 = scmp.eq.s32.totalorder %s23, 1
      %p74 = por %p72, %p73
      %p75 = scmp.ne.s32.totalorder %s64, %s65
      %p76 = scmp.eq.s32.totalorder %s23, 0
      %p77 = por %p75, %p76
      %p78 = scmp.ne.s32.totalorder %s64, %s65
      %p79 = scmp.eq.s32.totalorder %s24, 1
      %p80 = por %p78, %p79
      %p82 = scmp.ne.s32.totalorder %s65, %s81
      %p83 = scmp.eq.s32.totalorder %s24, 0
      %p84 = por %p82, %p83
      %s85 = sadd.s32 %s26, %s25
      %s86 = sadd.s32 %s33, %s37
      %s87 = ssub.s32 %s85, %s86
      %p88 = scmp.eq.s32.totalorder %s87, 0
      %s90 = sadd.s32 %s89, 1
      %s91 = scalar_select %p88, %s89, %s90
      %p94 = pneg %p88
      %p95 = scmp.eq.s32.totalorder %s18, 1
      %p96 = por %p94, %p95
      %p97 = scmp.ne.s32.totalorder %s89, %s92
      %p98 = scmp.eq.s32.totalorder %s18, 0
      %p99 = por %p97, %p98
      %p100 = scmp.ne.s32.totalorder %s89, %s92
      %p101 = scmp.eq.s32.totalorder %s23, 1
      %p102 = por %p100, %p101
      %p103 = scmp.ne.s32.totalorder %s92, %s93
      %p104 = scmp.eq.s32.totalorder %s23, 0
      %p105 = por %p103, %p104
      %p106 = scmp.ne.s32.totalorder %s92, %s93
      %p107 = scmp.eq.s32.totalorder %s24, 1
      %p108 = por %p106, %p107
      %p110 = scmp.ne.s32.totalorder %s93, %s109
      %p111 = scmp.eq.s32.totalorder %s24, 0
      %p112 = por %p110, %p111
      %p113 = scmp.le.s32.totalorder 1, %s18
      %p114 = scmp.lt.s32.totalorder %s18, 3
      %p115 = pnand %p113, %p114
      %p116 = pneg %p115
      // Predicated region
      $region9: #{tpu_custom_call.1} parent=5 // pred_check
        _
      $region10: #{tpu_custom_call.1} parent=5 // pred_check_branch
        %118 = sbr.rel (%p115) target = $region12
      $region11: #{tpu_custom_call.1} parent=5 // pred_region
        %s119 = ssub.s32 %s18, 1
        // Predicated region
        $region13: #{tpu_custom_call.1} parent=11 // pred_check
          %p120 = pneg %p51
        $region14: #{tpu_custom_call.1} parent=11 // pred_check_branch
          %122 = sbr.rel (%p120) target = $region16
        $region15: #{tpu_custom_call.1} parent=11 // pred_region
          %s124 = ssub.s32 4096, 4096
          %125 = vsyncadd [#allocation6], %s124
          %s126 = sshll.u32 [#allocation5], 4
          %s127 = int_to_ptr.vmem [resolvable:$true] %s126
          %132 = dma.hbm_to_vmem [thread:$0]  %s1, 4096, %s127, [#allocation6], 128, 128, 8
        $region16: #{tpu_custom_call.1} parent=11 // pred_fallthru
          _
        // Predicated region
        $region17: #{tpu_custom_call.1} parent=11 // pred_check
          %p133 = pneg %p77
        $region18: #{tpu_custom_call.1} parent=11 // pred_check_branch
          %135 = sbr.rel (%p133) target = $region20
        $region19: #{tpu_custom_call.1} parent=11 // pred_region
          %s137 = ssub.s32 128, 128
          %138 = vsyncadd [#allocation9], %s137
          %s139 = smul.addr %s27, 128
          %s140 = scalar_lea.hbm %s2, %s139
          %s142 = sshll.u32 [#allocation8], 4
          %s143 = int_to_ptr.vmem [resolvable:$true] %s142
          %145 = dma.hbm_to_vmem [thread:$0]  %s140, 128, %s143, [#allocation9]
        $region20: #{tpu_custom_call.1} parent=11 // pred_fallthru
          _
      $region12: #{tpu_custom_call.1} parent=5 // pred_fallthru
        _
      %p146 = scmp.lt.s32.totalorder %s18, 2
      // Predicated region
      $region21: #{tpu_custom_call.1} parent=5 // pred_check
        %p147 = pneg %p146
      $region22: #{tpu_custom_call.1} parent=5 // pred_check_branch
        %149 = sbr.rel (%p147) target = $region24
      $region23: #{tpu_custom_call.1} parent=5 // pred_region
        _
      $region24: #{tpu_custom_call.1} parent=5 // pred_fallthru
        _
      %p150 = scmp.le.s32.totalorder 1, %s18
      %p151 = scmp.lt.s32.totalorder %s18, 3
      %p152 = pnand %p150, %p151
      %p153 = pneg %p152
      // Predicated region
      $region25: #{tpu_custom_call.1} parent=5 // pred_check
        _
      $region26: #{tpu_custom_call.1} parent=5 // pred_check_branch
        %155 = sbr.rel (%p152) target = $region28
      $region27: #{tpu_custom_call.1} parent=5 // pred_region
        %s156 = ssub.s32 %s18, 1
        // Predicated region
        $region29: #{tpu_custom_call.1} parent=27 // pred_check
          %p157 = pneg %p51
        $region30: #{tpu_custom_call.1} parent=27 // pred_check_branch
          %159 = sbr.rel (%p157) target = $region32
        $region31: #{tpu_custom_call.1} parent=27 // pred_region
          %160 = dma.done [#allocation6], 4096
        $region32: #{tpu_custom_call.1} parent=27 // pred_fallthru
          _
        // Predicated region
        $region33: #{tpu_custom_call.1} parent=27 // pred_check
          %p161 = pneg %p77
        $region34: #{tpu_custom_call.1} parent=27 // pred_check_branch
          %163 = sbr.rel (%p161) target = $region36
        $region35: #{tpu_custom_call.1} parent=27 // pred_region
          %164 = dma.done [#allocation9], 128
        $region36: #{tpu_custom_call.1} parent=27 // pred_fallthru
          _
        %p165 = pneg %p51
        %p166 = pneg %p48
        %p167 = pneg %p77
        %p168 = pneg %p74
        %p169 = pneg %p105
        %p170 = pneg %p102
        %s171 = sand.u32 %s92, 1
        %s172 = scalar_lea.sflag [#allocation7], %s171
        %s173 = sand.u32 %s92, 1
        %s174 = smul.addr %s173, 8
        %s175 = scalar_lea.vmem [#allocation10], %s174
        %s176 = sadd.s32 %s28, %s27
        %s177 = smul.u32 %s28, 8
        %s178 = smul.u32 %s27, 8
        %s179 = sadd.s32 %s177, %s178
        %s180 = sld [smem:[#allocation4 + %s179]]
        %s181 = scalar_lea.vmem [#allocation5], %s180
        %v182 = vld [vmem:[%s181] sm:$0x1]
        %183 = vst [vmem:[#allocation2] sm:$0x1] %v182
        %s184 = sadd.s32 %s179, 1
        %s185 = sld [smem:[#allocation4 + %s184]]
        %s186 = scalar_lea.vmem [#allocation5], %s185
        %v187 = vld [vmem:[%s186] sm:$0x1]
        %188 = vst [vmem:[#allocation2 + $0x1] sm:$0x1] %v187
        %s189 = sadd.s32 %s179, 2
        %s190 = sld [smem:[#allocation4 + %s189]]
        %s191 = scalar_lea.vmem [#allocation5], %s190
        %v192 = vld [vmem:[%s191] sm:$0x1]
        %193 = vst [vmem:[#allocation2 + $0x2] sm:$0x1] %v192
        %s194 = sadd.s32 %s179, 3
        %s195 = sld [smem:[#allocation4 + %s194]]
        %s196 = scalar_lea.vmem [#allocation5], %s195
        %v197 = vld [vmem:[%s196] sm:$0x1]
        %198 = vst [vmem:[#allocation2 + $0x3] sm:$0x1] %v197
        %s199 = sadd.s32 %s179, 4
        %s200 = sld [smem:[#allocation4 + %s199]]
        %s201 = scalar_lea.vmem [#allocation5], %s200
        %v202 = vld [vmem:[%s201] sm:$0x1]
        %203 = vst [vmem:[#allocation2 + $0x4] sm:$0x1] %v202
        %s204 = sadd.s32 %s179, 5
        %s205 = sld [smem:[#allocation4 + %s204]]
        %s206 = scalar_lea.vmem [#allocation5], %s205
        %v207 = vld [vmem:[%s206] sm:$0x1]
        %208 = vst [vmem:[#allocation2 + $0x5] sm:$0x1] %v207
        %s209 = sadd.s32 %s179, 6
        %s210 = sld [smem:[#allocation4 + %s209]]
        %s211 = scalar_lea.vmem [#allocation5], %s210
        %v212 = vld [vmem:[%s211] sm:$0x1]
        %213 = vst [vmem:[#allocation2 + $0x6] sm:$0x1] %v212
        %s214 = sadd.s32 %s179, 7
        %s215 = sld [smem:[#allocation4 + %s214]]
        %s216 = scalar_lea.vmem [#allocation5], %s215
        %v217 = vld [vmem:[%s216] sm:$0x1]
        %218 = vst [vmem:[#allocation2 + $0x7] sm:$0x1] %v217
        %v219 = vld [vmem:[#allocation2] sm:$0xff]
        %v220 = vmul.f32 %v219, 11.313708
        %v221 = vld [vmem:[#allocation8] sm:$0xff]
        %v222 = vadd.f32 %v220, %v221
        %223 = vst [vmem:[%s175] sm:$0xff] %v222
        %s224 = sand.u32 %s92, 1
        %s225 = scalar_lea.sflag [#allocation7], %s224
        %s226 = sand.u32 %s92, 1
        %s227 = smul.addr %s226, 8
        %s228 = scalar_lea.vmem [#allocation10], %s227
        // Predicated region
        $region37: #{tpu_custom_call.1} parent=27 // pred_check
          %p229 = pneg %p102
        $region38: #{tpu_custom_call.1} parent=27 // pred_check_branch
          %231 = sbr.rel (%p229) target = $region40
        $region39: #{tpu_custom_call.1} parent=27 // pred_region
          %s232 = sadd.s32 %s28, %s27
          %s234 = ssub.s32 128, 128
          %235 = vsyncadd %s225, %s234
          %s236 = smul.addr %s232, 128
          %s237 = scalar_lea.hbm %s3, %s236
          %s239 = sshll.u32 %s228, 4
          %s240 = int_to_ptr.vmem [resolvable:$true] %s239
          %242 = dma.vmem_to_hbm [thread:$0]  %s240, 128, %s237, %s225
        $region40: #{tpu_custom_call.1} parent=27 // pred_fallthru
          _
      $region28: #{tpu_custom_call.1} parent=5 // pred_fallthru
        _
      %p243 = scmp.le.s32.totalorder 2, %s18
      // Predicated region
      $region41: #{tpu_custom_call.1} parent=5 // pred_check
        %p244 = pneg %p243
      $region42: #{tpu_custom_call.1} parent=5 // pred_check_branch
        %246 = sbr.rel (%p244) target = $region44
      $region43: #{tpu_custom_call.1} parent=5 // pred_region
        %s247 = ssub.s32 %s18, 2
        // Predicated region
        $region45: #{tpu_custom_call.1} parent=43 // pred_check
          %p248 = pneg %p108
        $region46: #{tpu_custom_call.1} parent=43 // pred_check_branch
          %250 = sbr.rel (%p248) target = $region48
        $region47: #{tpu_custom_call.1} parent=43 // pred_region
          %s251 = sand.u32 %s93, 1
          %s252 = scalar_lea.sflag [#allocation7], %s251
          %s253 = sand.u32 %s93, 1
          %s254 = smul.addr %s253, 8
          %s255 = scalar_lea.vmem [#allocation10], %s254
          %256 = dma.done %s252, 128
        $region48: #{tpu_custom_call.1} parent=43 // pred_fallthru
          _
      $region44: #{tpu_custom_call.1} parent=5 // pred_fallthru
        _
    $region6: #{tpu_custom_call.1} parent=1 // loop_footer
      %s22 = sadd.s32 1, %s18
    $region7: #{tpu_custom_call.1} parent=1 // loop_footer_branch
      %17 = sbr.rel target = $region3
    $region8: #{tpu_custom_call.1} parent=1 // loop_exit
      _
    %257 = vsyncpa [#allocation6], 1
    %s258 = scalar_lea.sflag [#allocation6], 1
    %259 = vsyncpa %s258, 1
    %260 = vsyncpa [#allocation9], 1
    %261 = vsyncpa [#allocation7], 1
    %s262 = scalar_lea.sflag [#allocation7], 1
    %263 = vsyncpa %s262, 1

</llo_original>
